<compile_context>
chip_gen: v5e
topology: v5e:2x2
jax: 0.10.0
libtpu: 0.0.40
codegen_flags: <defaults>
</compile_context>

<pallas_src>
import jax
import jax.numpy as jnp
from jax.experimental import pallas as pl
from jax.experimental.pallas import tpu as pltpu

MARGIN = 1.0   # module hard-codes self.margin = 1.0 regardless of ctor arg
EPS = 1e-06    # module hard-codes self.eps = 1e-06

# VMEM budget reserved for the double-buffered embedding tiles
# (2 inputs x 2 pipeline buffers).  Safe on every generation (v7x physical
# VMEM is 64 MiB; v5e's 16 MiB default scoped limit is raised below).
_VMEM_INPUT_BUDGET = 16 << 20
_MAX_TILE_ROWS = 2048
_MIN_TILE_ROWS = 8


def _round_up(x, m):
    return (x + m - 1) // m * m


def _contrastive_kernel(e1_ref, e2_ref, cpos_ref, cneg_ref, out_ref, acc_ref):
    # e1_ref/e2_ref : (TB, D) tiles in native dtype (cast to f32 in-kernel)
    # cpos_ref      : (TB, 1) f32 = valid_mask * label
    # cneg_ref      : (TB, 1) f32 = valid_mask * (1 - label)
    # out_ref       : (1, 1, 1) f32 -- per-core partial sum
    # acc_ref       : (1, 1) f32 VMEM accumulator, persists over inner axis
    @pl.when(pl.program_id(1) == 0)
    def _init():
        acc_ref[...] = jnp.zeros_like(acc_ref)

    e1 = e1_ref[...].astype(jnp.float32)
    e2 = e2_ref[...].astype(jnp.float32)

    diff = e1 - e2 + EPS                                    # (TB, D)  VPU
    dist_sqr = jnp.sum(diff * diff, axis=1, keepdims=True)  # (TB, 1)  XLU
    dist = jnp.sqrt(dist_sqr)                               # (TB, 1)  EUP
    mdist = jnp.maximum(MARGIN - dist, 0.0)                 # clamp(min=0)
    loss = cpos_ref[...] * dist_sqr + cneg_ref[...] * (mdist * mdist)

    acc_ref[...] += jnp.sum(loss, axis=0, keepdims=True)    # (1, 1)   XLU

    @pl.when(pl.program_id(1) == pl.num_programs(1) - 1)
    def _finalize():
        out_ref[0] = acc_ref[...]


def contrastive_loss(embedding1, embedding2, label):
    """embedding1, embedding2: (B, D) float; label: (B,) int/bool/float."""
    B, D = embedding1.shape
    itemsize = jnp.dtype(embedding1.dtype).itemsize

    # Two partial sums (one per TensorCore with megacore sharding) when the
    # batch is big enough to split; on single-TC chips the axis serializes.
    num_cores = 2 if B >= 16 else 1

    # Tile rows: as large as the double-buffered input budget allows.
    bytes_per_row = 2 * 2 * D * itemsize          # 2 inputs x 2 buffers
    tb_cap = max(_MIN_TILE_ROWS,
                 (_VMEM_INPUT_BUDGET // bytes_per_row) // 8 * 8)
    tb_cap = min(tb_cap, _MAX_TILE_ROWS)

    rows_per_core = -(-B // num_cores)
    tile_rows = min(tb_cap, _round_up(rows_per_core, 8))
    tiles_per_core = -(-rows_per_core // tile_rows)
    b_pad = num_cores * tiles_per_core * tile_rows

    # Fold label + valid-row mask into two per-row coefficient columns so the
    # kernel never handles the mask separately (padded rows contribute 0).
    lbl = label.astype(jnp.float32).reshape(B, 1)
    valid = (jnp.arange(b_pad) < B).astype(jnp.float32).reshape(b_pad, 1)
    lbl_pad = jnp.pad(lbl, ((0, b_pad - B), (0, 0))) if b_pad != B else lbl
    cpos = valid * lbl_pad
    cneg = valid * (1.0 - lbl_pad)

    # Keep embeddings in their native dtype (no HBM-doubling wrapper upcast);
    # the kernel casts tiles to f32 after the DMA.
    e1, e2 = embedding1, embedding2
    pad = b_pad - B
    if pad:
        e1 = jnp.pad(e1, ((0, pad), (0, 0)))
        e2 = jnp.pad(e2, ((0, pad), (0, 0)))

    # Explicit scoped-VMEM limit (v5e default is only 16 MiB): double-buffered
    # embedding tiles + coefficient columns + headroom.
    inflight = 2 * (2 * tile_rows * D * itemsize + 2 * tile_rows * 4)
    vmem_limit = min(max(inflight + (4 << 20), 16 << 20), 48 << 20)

    row_map = lambda c, i: (c * tiles_per_core + i, 0)

    partials = pl.pallas_call(
        _contrastive_kernel,
        out_shape=jax.ShapeDtypeStruct((num_cores, 1, 1), jnp.float32),
        grid_spec=pltpu.PrefetchScalarGridSpec(
            num_scalar_prefetch=0,
            grid=(num_cores, tiles_per_core),
            in_specs=[
                pl.BlockSpec((tile_rows, D), row_map),
                pl.BlockSpec((tile_rows, D), row_map),
                pl.BlockSpec((tile_rows, 1), row_map),
                pl.BlockSpec((tile_rows, 1), row_map),
            ],
            out_specs=pl.BlockSpec((1, 1, 1), lambda c, i: (c, 0, 0)),
            scratch_shapes=[pltpu.VMEM((1, 1), jnp.float32)],
        ),
        compiler_params=pltpu.CompilerParams(
            dimension_semantics=("parallel", "arbitrary"),
            vmem_limit_bytes=vmem_limit,
        ),
    )(e1, e2, cpos, cneg)

    # Normalize by the TOTAL batch size (not the tile size).
    return jnp.sum(partials) / 2.0 / B


def _reference(e1, e2, label):
    # Pure-JAX f32 reference mirroring the PyTorch forward exactly.
    e1 = e1.astype(jnp.float32)
    e2 = e2.astype(jnp.float32)
    dist_sqr = jnp.sum((e1 - e2 + EPS) ** 2, axis=1)
    dist = jnp.sqrt(dist_sqr)
    mdist = jnp.clip(MARGIN - dist, 0.0, None)
    lbl = label.astype(jnp.float32)
    loss = lbl * dist_sqr + (1.0 - lbl) * mdist ** 2
    return jnp.sum(loss) / 2.0 / e1.shape[0]


if __name__ == "__main__":
    # Small primary test (single tile, single core split).
    k1, k2, k3 = jax.random.split(jax.random.PRNGKey(0), 3)
    B, D = 8, 32
    embedding1 = jax.random.normal(k1, (B, D), dtype=jnp.float32)
    embedding2 = jax.random.normal(k2, (B, D), dtype=jnp.float32)
    label = jax.random.bernoulli(k3, 0.5, (B,)).astype(jnp.int32)

    loss = contrastive_loss(embedding1, embedding2, label)
    jax.block_until_ready(loss)
    ref = _reference(embedding1, embedding2, label)
    assert jnp.allclose(loss, ref, rtol=1e-5, atol=1e-6), (loss, ref)

    # Secondary test exercising padding + two-partial-sum (megacore) path.
    kk1, kk2, kk3 = jax.random.split(jax.random.PRNGKey(1), 3)
    B2, D2 = 20, 32
    e1b = jax.random.normal(kk1, (B2, D2), dtype=jnp.float32)
    e2b = jax.random.normal(kk2, (B2, D2), dtype=jnp.float32)
    lb = jax.random.bernoulli(kk3, 0.5, (B2,)).astype(jnp.int32)
    loss2 = contrastive_loss(e1b, e2b, lb)
    jax.block_until_ready(loss2)
    ref2 = _reference(e1b, e2b, lb)
    assert jnp.allclose(loss2, ref2, rtol=1e-5, atol=1e-6), (loss2, ref2)

    # Larger bf16 test: native-dtype DMA + in-kernel f32 cast + padding.
    kl1, kl2, kl3 = jax.random.split(jax.random.PRNGKey(2), 3)
    B3, D3 = 300, 128
    e1c = jax.random.normal(kl1, (B3, D3), dtype=jnp.bfloat16)
    e2c = jax.random.normal(kl2, (B3, D3), dtype=jnp.bfloat16)
    lc = jax.random.bernoulli(kl3, 0.5, (B3,)).astype(jnp.int32)
    loss3 = contrastive_loss(e1c, e2c, lc)
    jax.block_until_ready(loss3)
    ref3 = _reference(e1c, e2c, lc)
    assert jnp.allclose(loss3, ref3, rtol=1e-4, atol=1e-5), (loss3, ref3)

    print("KERNEL_OK")
</pallas_src>

<mosaic_0001>
module attributes {stable_mosaic.version = 11 : i64} {
  func.func @_contrastive_kernel(%arg0: i32, %arg1: i32, %arg2: memref<8x32xf32, #tpu.memory_space<vmem>>, %arg3: memref<8x32xf32, #tpu.memory_space<vmem>>, %arg4: memref<8x1xf32, #tpu.memory_space<vmem>>, %arg5: memref<8x1xf32, #tpu.memory_space<vmem>>, %arg6: memref<1x1x1xf32, #tpu.memory_space<vmem>>, %arg7: memref<1x1xf32, #tpu.memory_space<vmem>>) attributes {dimension_semantics = [#tpu.dimension_semantics<parallel>, #tpu.dimension_semantics<arbitrary>], iteration_bounds = array<i64: 1, 1>, scalar_prefetch = 0 : i64, scratch_operands = 1 : i64, tpu.core_type = #tpu.core_type<tc>, window_params = [{transform_indices = @transform_0, window_bounds = array<i64: 8, 32>}, {transform_indices = @transform_1, window_bounds = array<i64: 8, 32>}, {transform_indices = @transform_2, window_bounds = array<i64: 8, 1>}, {transform_indices = @transform_3, window_bounds = array<i64: 8, 1>}, {transform_indices = @transform_4, window_bounds = array<i64: 1, 1, 1>}]} {
    %c0_i32 = arith.constant 0 : i32
    %0 = arith.cmpi eq, %arg1, %c0_i32 : i32
    %1 = arith.extui %0 : i1 to i32
    %c0_i32_0 = arith.constant 0 : i32
    %2 = arith.cmpi ne, %1, %c0_i32_0 : i32
    scf.if %2 {
      %cst_18 = arith.constant 0.000000e+00 : f32
      %30 = vector.broadcast %cst_18 : f32 to vector<1x1xf32>
      %c0_19 = arith.constant 0 : index
      %c0_20 = arith.constant 0 : index
      %31 = vector.load %arg7[%c0_19, %c0_20] : memref<1x1xf32, #tpu.memory_space<vmem>>, vector<1x1xf32>
      tpu.vector_store %arg7[%c0_19, %c0_20], %30 {strides = array<i32>} : memref<1x1xf32, #tpu.memory_space<vmem>>, vector<1x1xf32>,
    } else {
    }
    %c0 = arith.constant 0 : index
    %c0_1 = arith.constant 0 : index
    %3 = vector.load %arg2[%c0, %c0_1] : memref<8x32xf32, #tpu.memory_space<vmem>>, vector<8x32xf32>
    %c0_2 = arith.constant 0 : index
    %c0_3 = arith.constant 0 : index
    %4 = vector.load %arg3[%c0_2, %c0_3] : memref<8x32xf32, #tpu.memory_space<vmem>>, vector<8x32xf32>
    %5 = arith.subf %3, %4 : vector<8x32xf32>
    %cst = arith.constant 9.99999997E-7 : f32
    %6 = vector.broadcast %cst : f32 to vector<8x32xf32>
    %7 = arith.addf %5, %6 : vector<8x32xf32>
    %8 = arith.mulf %7, %7 : vector<8x32xf32>
    %cst_4 = arith.constant dense<0.000000e+00> : vector<8xf32>
    %9 = vector.multi_reduction <add>, %8, %cst_4 [1] : vector<8x32xf32> to vector<8xf32>
    %10 = vector.shape_cast %9 : vector<8xf32> to vector<8x1xf32>
    %11 = math.sqrt %10 : vector<8x1xf32>
    %cst_5 = arith.constant 1.000000e+00 : f32
    %12 = vector.broadcast %cst_5 : f32 to vector<8x1xf32>
    %13 = arith.subf %12, %11 : vector<8x1xf32>
    %cst_6 = arith.constant 0.000000e+00 : f32
    %14 = vector.broadcast %cst_6 : f32 to vector<8x1xf32>
    %15 = arith.maximumf %13, %14 : vector<8x1xf32>
    %c0_7 = arith.constant 0 : index
    %c0_8 = arith.constant 0 : index
    %16 = vector.load %arg4[%c0_7, %c0_8] : memref<8x1xf32, #tpu.memory_space<vmem>>, vector<8x1xf32>
    %17 = arith.mulf %16, %10 : vector<8x1xf32>
    %c0_9 = arith.constant 0 : index
    %c0_10 = arith.constant 0 : index
    %18 = vector.load %arg5[%c0_9, %c0_10] : memref<8x1xf32, #tpu.memory_space<vmem>>, vector<8x1xf32>
    %19 = arith.mulf %15, %15 : vector<8x1xf32>
    %20 = arith.mulf %18, %19 : vector<8x1xf32>
    %21 = arith.addf %17, %20 : vector<8x1xf32>
    %c0_11 = arith.constant 0 : index
    %c0_12 = arith.constant 0 : index
    %22 = vector.load %arg7[%c0_11, %c0_12] : memref<1x1xf32, #tpu.memory_space<vmem>>, vector<1x1xf32>
    %cst_13 = arith.constant dense<0.000000e+00> : vector<1xf32>
    %23 = vector.multi_reduction <add>, %21, %cst_13 [0] : vector<8x1xf32> to vector<1xf32>
    %24 = vector.shape_cast %23 : vector<1xf32> to vector<1x1xf32>
    %25 = arith.addf %22, %24 : vector<1x1xf32>
    %c0_14 = arith.constant 0 : index
    %c0_15 = arith.constant 0 : index
    %26 = vector.load %arg7[%c0_14, %c0_15] : memref<1x1xf32, #tpu.memory_space<vmem>>, vector<1x1xf32>
    tpu.vector_store %arg7[%c0_14, %c0_15], %25 {strides = array<i32>} : memref<1x1xf32, #tpu.memory_space<vmem>>, vector<1x1xf32>,
    %c0_i32_16 = arith.constant 0 : i32
    %27 = arith.cmpi eq, %arg1, %c0_i32_16 : i32
    %28 = arith.extui %27 : i1 to i32
    %c0_i32_17 = arith.constant 0 : i32
    %29 = arith.cmpi ne, %28, %c0_i32_17 : i32
    scf.if %29 {
      %c0_18 = arith.constant 0 : index
      %c0_19 = arith.constant 0 : index
      %30 = vector.load %arg7[%c0_18, %c0_19] : memref<1x1xf32, #tpu.memory_space<vmem>>, vector<1x1xf32>
      %c0_20 = arith.constant 0 : index
      %c0_21 = arith.constant 0 : index
      %c0_22 = arith.constant 0 : index
      %31 = vector.load %arg6[%c0_20, %c0_21, %c0_22] : memref<1x1x1xf32, #tpu.memory_space<vmem>>, vector<1x1x1xf32>
      %32 = vector.shape_cast %31 : vector<1x1x1xf32> to vector<1x1xf32>
      %33 = vector.shape_cast %30 : vector<1x1xf32> to vector<1x1x1xf32>
      tpu.vector_store %arg6[%c0_20, %c0_21, %c0_22], %33 {strides = array<i32>} : memref<1x1x1xf32, #tpu.memory_space<vmem>>, vector<1x1x1xf32>,
    } else {
    }
    return
  }
  func.func @transform_0(%arg0: i32, %arg1: i32) -> (i32, i32) {
    %c1_i32 = arith.constant 1 : i32
    %0 = arith.muli %arg0, %c1_i32 : i32
    %1 = arith.addi %0, %arg1 : i32
    %c0_i32 = arith.constant 0 : i32
    %c0_i32_0 = arith.constant 0 : i32
    return %1, %c0_i32 : i32, i32
  }
  func.func @transform_1(%arg0: i32, %arg1: i32) -> (i32, i32) {
    %c1_i32 = arith.constant 1 : i32
    %0 = arith.muli %arg0, %c1_i32 : i32
    %1 = arith.addi %0, %arg1 : i32
    %c0_i32 = arith.constant 0 : i32
    %c0_i32_0 = arith.constant 0 : i32
    return %1, %c0_i32 : i32, i32
  }
  func.func @transform_2(%arg0: i32, %arg1: i32) -> (i32, i32) {
    %c1_i32 = arith.constant 1 : i32
    %0 = arith.muli %arg0, %c1_i32 : i32
    %1 = arith.addi %0, %arg1 : i32
    %c0_i32 = arith.constant 0 : i32
    %c0_i32_0 = arith.constant 0 : i32
    return %1, %c0_i32 : i32, i32
  }
  func.func @transform_3(%arg0: i32, %arg1: i32) -> (i32, i32) {
    %c1_i32 = arith.constant 1 : i32
    %0 = arith.muli %arg0, %c1_i32 : i32
    %1 = arith.addi %0, %arg1 : i32
    %c0_i32 = arith.constant 0 : i32
    %c0_i32_0 = arith.constant 0 : i32
    return %1, %c0_i32 : i32, i32
  }
  func.func @transform_4(%arg0: i32, %arg1: i32) -> (i32, i32, i32) {
    %c0_i32 = arith.constant 0 : i32
    %c0_i32_0 = arith.constant 0 : i32
    %c0_i32_1 = arith.constant 0 : i32
    return %arg0, %c0_i32, %c0_i32_0 : i32, i32, i32
  }
}

</mosaic_0001>

<llo_original>
// kernel: tpu_custom_call.1
$region0: #{tpu_custom_call.1}
  #allocation0 [shape = 'u32[]', space=smem, size = 0x4, offset = 0x4, fixed_abs, tag = 'smem constant byte address 0x4 - core index']
  #allocation1 [shape = 'u32[72,128]{1,0:T(1,128)}', space=vmem, size = 0x9000, scoped, tag = 'internal scratch']
  #allocation2 [shape = 'f32[1,1]{1,0:T(1,128)}', space=vmem, size = 0x200, scoped, tag = 'scratch operand']
  %s0 = inlined_call_operand.vmem [shape: f32[8,32], index: 0, kind: input, shape index: {}]
  %s1 = inlined_call_operand.vmem [shape: f32[8,32], index: 1, kind: input, shape index: {}]
  %s2 = inlined_call_operand.vmem [shape: f32[8,1], index: 2, kind: input, shape index: {}]
  %s3 = inlined_call_operand.vmem [shape: f32[8,1], index: 3, kind: input, shape index: {}]
  %s4 = inlined_call_operand.hbm [shape: f32[1,1,1], index: 4, kind: output, shape index: {}]
  %s5 = sld [smem:[#allocation0]]
  $region34: #{tpu_custom_call.1} parent=0
    _
  %s7 = ssub.s32 1, %s5
  %s8 = scalar_select 0, %s7, %s5
  $region1: #{tpu_custom_call.1} parent=0
    #allocation3 [shape = 'u8[512]{0}', space=vmem, size = 0x400, scoped, tag = 'output window, operand 0, single buffered']
    #allocation4 [shape = 's32[1]{0}', space=sflag, size = 0x4, scoped, tag = 'scoped memory for tpu_custom_call.1']
    %9 = vsyncpa [#allocation4], 0
    // Predicated region
    $region2: #{tpu_custom_call.1} parent=1 // pred_check
      _
    $region3: #{tpu_custom_call.1} parent=1 // pred_check_branch
      %11 = sbr.rel (0) target = $region5
    $region4: #{tpu_custom_call.1} parent=1 // pred_region
      %s12 = sadd.s32 0, 0
      %p13 = scmp.lt.s32.totalorder %s12, 0
      %s14 = scalar_select %p13, %s12, 0
      %s15 = smul.addr %s14, 8
      %s16 = scalar_lea.vmem %s0, %s15
      %s17 = sadd.s32 0, 0
    $region5: #{tpu_custom_call.1} parent=1 // pred_fallthru
      _
    // Predicated region
    $region6: #{tpu_custom_call.1} parent=1 // pred_check
      _
    $region7: #{tpu_custom_call.1} parent=1 // pred_check_branch
      %19 = sbr.rel (0) target = $region9
    $region8: #{tpu_custom_call.1} parent=1 // pred_region
      %s20 = sadd.s32 0, 0
      %p21 = scmp.lt.s32.totalorder %s20, 0
      %s22 = scalar_select %p21, %s20, 0
      %s23 = smul.addr %s22, 8
      %s24 = scalar_lea.vmem %s1, %s23
      %s25 = sadd.s32 0, 0
    $region9: #{tpu_custom_call.1} parent=1 // pred_fallthru
      _
    // Predicated region
    $region10: #{tpu_custom_call.1} parent=1 // pred_check
      _
    $region11: #{tpu_custom_call.1} parent=1 // pred_check_branch
      %27 = sbr.rel (0) target = $region13
    $region12: #{tpu_custom_call.1} parent=1 // pred_region
      %s28 = sadd.s32 0, 0
      %p29 = scmp.lt.s32.totalorder %s28, 0
      %s30 = scalar_select %p29, %s28, 0
      %s31 = smul.addr %s30, 8
      %s32 = scalar_lea.vmem %s2, %s31
      %s33 = sadd.s32 0, 0
    $region13: #{tpu_custom_call.1} parent=1 // pred_fallthru
      _
    // Predicated region
    $region14: #{tpu_custom_call.1} parent=1 // pred_check
      _
    $region15: #{tpu_custom_call.1} parent=1 // pred_check_branch
      %35 = sbr.rel (0) target = $region17
    $region16: #{tpu_custom_call.1} parent=1 // pred_region
      %s36 = sadd.s32 0, 0
      %p37 = scmp.lt.s32.totalorder %s36, 0
      %s38 = scalar_select %p37, %s36, 0
      %s39 = smul.addr %s38, 8
      %s40 = scalar_lea.vmem %s3, %s39
      %s41 = sadd.s32 0, 0
    $region17: #{tpu_custom_call.1} parent=1 // pred_fallthru
      _
    %s42 = sadd.s32 0, 0
    %p43 = scmp.lt.s32.totalorder %s42, 0
    %s44 = scalar_select %p43, %s42, 0
    %s45 = smul.addr %s44, 8
    %s46 = scalar_lea.vmem %s0, %s45
    %s47 = sadd.s32 0, 0
    %p48 = scmp.lt.s32.totalorder %s47, 0
    %s49 = scalar_select %p48, %s47, 0
    %s50 = smul.addr %s49, 8
    %s51 = scalar_lea.vmem %s1, %s50
    %s52 = sadd.s32 0, 0
    %p53 = scmp.lt.s32.totalorder %s52, 0
    %s54 = scalar_select %p53, %s52, 0
    %s55 = smul.addr %s54, 8
    %s56 = scalar_lea.vmem %s2, %s55
    %s57 = sadd.s32 0, 0
    %p58 = scmp.lt.s32.totalorder %s57, 0
    %s59 = scalar_select %p58, %s57, 0
    %s60 = smul.addr %s59, 8
    %s61 = scalar_lea.vmem %s3, %s60
    %s62 = sadd.s32 0, 0
    %p63 = scmp.lt.s32.totalorder %s62, 0
    %s64 = scalar_select %p63, %s62, 0
    %s65 = smul.addr %s64, 8
    %s66 = scalar_lea.vmem %s0, %s65
    %s67 = sadd.s32 0, 0
    %s68 = sadd.s32 0, 0
    %p69 = scmp.lt.s32.totalorder %s68, 0
    %s70 = scalar_select %p69, %s68, 0
    %s71 = smul.addr %s70, 8
    %s72 = scalar_lea.vmem %s1, %s71
    %s73 = sadd.s32 0, 0
    %s74 = sadd.s32 0, 0
    %p75 = scmp.lt.s32.totalorder %s74, 0
    %s76 = scalar_select %p75, %s74, 0
    %s77 = smul.addr %s76, 8
    %s78 = scalar_lea.vmem %s2, %s77
    %s79 = sadd.s32 0, 0
    %s80 = sadd.s32 0, 0
    %p81 = scmp.lt.s32.totalorder %s80, 0
    %s82 = scalar_select %p81, %s80, 0
    %s83 = smul.addr %s82, 8
    %s84 = scalar_lea.vmem %s3, %s83
    %s85 = sadd.s32 0, 0
    %p86 = scmp.eq.s32.totalorder 0, 0
    // Predicated region
    $region18: #{tpu_custom_call.1} parent=1 // pred_check
      %p87 = pneg %p86
    $region19: #{tpu_custom_call.1} parent=1 // pred_check_branch
      %89 = sbr.rel (%p87) target = $region21
    $region20: #{tpu_custom_call.1} parent=1 // pred_region
      %vm90 = vcmask 0
      %91 = vst.msk [vmem:[#allocation2] sm:$0x1] %vm90, 0.0
    $region21: #{tpu_custom_call.1} parent=1 // pred_fallthru
      _
    %v92 = vld [vmem:[%s66] sm:$0xff]
    %v93 = vld [vmem:[%s72] sm:$0xff]
    %v94 = vsub.f32 %v92, %v93
    %v95 = vadd.f32 %v94, 1e-06
    %v96 = vmul.f32 %v95, %v95
    %vm97 = vcmask 261120
    %v98 = vsel %vm97, %v96, 0.0
    %99 = vadd.xlane.f32.xlu0 %v98
    %v100 = vpop.xlane.xlu0 %99
    %v101 = vrsqrt.pop %v100
    %v102 = vmul.f32 %v101, %v100
    %v103 = vmul.f32 %v102, %v101
    %v104 = vmul.f32 0.5, %v103
    %v105 = vsub.f32 1.5, %v104
    %v106 = vmul.f32 %v101, %v105
    %v107 = vmul.f32 %v100, %v106
    %vm108 = vcmp.eq.f32.partialorder %v100, inf
    %v109 = vsel %vm108, %v100, %v107
    %vm110 = vcmp.eq.f32.partialorder %v100, 0.0
    %v111 = vand.u32 %v100, 2147483648
    %v112 = vsel %vm110, %v111, %v109
    %v113 = vsub.f32 1.0, %v112
    %v114 = vmax.f32 %v113, 0.0
    %v115 = vld [vmem:[%s78] sm:$0xff]
    %v116 = vmul.f32 %v115, %v100
    %v117 = vld [vmem:[%s84] sm:$0xff]
    %v118 = vmul.f32 %v114, %v114
    %v119 = vmul.f32 %v117, %v118
    %v120 = vadd.f32 %v116, %v119
    %v121 = vld [vmem:[#allocation2] sm:$0x1]
    %vm122 = vcmask 7168
    %v123 = vsel %vm122, %v120, 0.0
    %v124 = vrot.slane %v123, 4
    %v125 = vadd.f32 %v123, %v124
    %v126 = vrot.slane %v125, 2
    %v127 = vadd.f32 %v125, %v126
    %v128 = vrot.slane %v127, 1
    %v129 = vadd.f32 %v127, %v128
    %v130 = vadd.f32 %v121, %v129
    %vm131 = vcmask 0
    %132 = vst.msk [vmem:[#allocation2] sm:$0x1] %vm131, %v130
    // Predicated region
    $region22: #{tpu_custom_call.1} parent=1 // pred_check
      %p133 = pneg %p86
    $region23: #{tpu_custom_call.1} parent=1 // pred_check_branch
      %135 = sbr.rel (%p133) target = $region25
    $region24: #{tpu_custom_call.1} parent=1 // pred_region
      %v136 = vld [vmem:[#allocation2] sm:$0x1]
      %137 = vst.msk [vmem:[#allocation3] sm:$0x1] %vm131, %v136
    $region25: #{tpu_custom_call.1} parent=1 // pred_fallthru
      _
    // Predicated region
    $region26: #{tpu_custom_call.1} parent=1 // pred_check
      _
    $region27: #{tpu_custom_call.1} parent=1 // pred_check_branch
      %139 = sbr.rel (0) target = $region29
    $region28: #{tpu_custom_call.1} parent=1 // pred_region
      %141 = vsyncadd [#allocation4], 0
      %s143 = sshll.u32 [#allocation3], 4
      %s144 = int_to_ptr.vmem [resolvable:$true] %s143
      %s145 = sshll.u32 %s4, 4
      %s146 = int_to_ptr.hbm [resolvable:$true] %s145
      %148 = dma.vmem_to_hbm [thread:$0]  %s144, 16, %s146, [#allocation4]
    $region29: #{tpu_custom_call.1} parent=1 // pred_fallthru
      _
    // Predicated region
    $region30: #{tpu_custom_call.1} parent=1 // pred_check
      _
    $region31: #{tpu_custom_call.1} parent=1 // pred_check_branch
      %150 = sbr.rel (0) target = $region33
    $region32: #{tpu_custom_call.1} parent=1 // pred_region
      %152 = dma.done [#allocation4], 16
    $region33: #{tpu_custom_call.1} parent=1 // pred_fallthru
      _
    %153 = vsyncpa [#allocation4], 1

</llo_original>
